<compile_context>
chip_gen: v7x
topology: tpu7x:2x2x1
jax: 0.10.0
libtpu: 0.0.40
codegen_flags: <defaults>
</compile_context>

<pallas_src>
import jax
import jax.numpy as jnp
from jax.experimental import pallas as pl
from jax.experimental.pallas import tpu as pltpu


def _tanh_kernel(x_ref, o_ref):
    # Cast once per tile and compute in f32 (v5e has no bf16 VPU/EUP path);
    # tanh itself goes to the EUP.
    x = x_ref[...].astype(jnp.float32)
    o_ref[...] = jnp.tanh(x).astype(o_ref.dtype)


def _sublane_packing(dtype):
    # Sublane packing factor per dtype width: f32 -> 8, bf16/f16 -> 16, 8-bit -> 32.
    itemsize = jnp.dtype(dtype).itemsize
    if itemsize >= 4:
        return 8
    if itemsize == 2:
        return 16
    return 32


def tanh_pallas(x, *, lane_cols=1024, tile_rows=1024):
    """Elementwise tanh via a lane-dense Pallas TPU kernel.

    Accepts any shape (0-D, 1-D, N-D); everything is routed through the same
    flatten-to-(rows, lane_cols) path so large 1-D inputs are tiled/pipelined
    instead of landing in a single untiled VMEM block.
    """
    orig_shape = x.shape
    orig_dtype = x.dtype

    # torch.tanh promotes integer inputs to float; mirror that with f32.
    if not jnp.issubdtype(orig_dtype, jnp.floating):
        x = x.astype(jnp.float32)
    out_dtype = x.dtype

    total = x.size
    if total == 0:
        return jnp.tanh(x).reshape(orig_shape)

    # Flatten to a lane-dense 2-D slab: last dim = lane_cols (multiple of 128).
    L = int(lane_cols)
    x_flat = x.reshape(-1)
    pad = (-total) % L
    if pad:
        # Only a tail of < L elements is padded (keeps the lane dim 128-aligned).
        x_flat = jnp.pad(x_flat, (0, pad))
    rows = (total + pad) // L
    x2 = x_flat.reshape(rows, L)

    # Row tile: multiple of the dtype's sublane packing, or the full row extent.
    packing = _sublane_packing(out_dtype)
    tr = min(int(tile_rows), rows)
    if tr >= packing:
        tr = (tr // packing) * packing
    # Ragged last block along rows is masked by Pallas; no jnp.pad of rows needed.
    grid = (pl.cdiv(rows, tr),)

    itemsize = jnp.dtype(out_dtype).itemsize
    cost = pl.CostEstimate(
        flops=0,
        transcendentals=rows * L,
        bytes_accessed=2 * rows * L * itemsize,
    )

    out = pl.pallas_call(
        _tanh_kernel,
        out_shape=jax.ShapeDtypeStruct((rows, L), out_dtype),
        grid=grid,
        in_specs=[pl.BlockSpec((tr, L), lambda i: (i, 0))],
        out_specs=pl.BlockSpec((tr, L), lambda i: (i, 0)),
        compiler_params=pltpu.CompilerParams(
            dimension_semantics=("parallel",),   # lets v7x shard rows over 2 TCs
            vmem_limit_bytes=48 * 1024 * 1024,   # 16 MiB used; headroom on v7x's 64 MiB
        ),
        cost_estimate=cost,
    )(x2)

    out_flat = out.reshape(-1)
    if pad:
        out_flat = out_flat[:total]
    return out_flat.reshape(orig_shape)


class TanhPallas:
    """Mirror of the PyTorch Tanh module (forward pass via Pallas kernel)."""

    def __init__(self):
        self.s = 0
        self.x = 0

    def forward(self, inputs):
        self.s = inputs
        self.x = tanh_pallas(inputs)
        return self.x

    # TODO(synk): backward()/moment()/adam() training bookkeeping not ported
    # (forward-only translation).
    def param(self):
        return [(None, None)]


if __name__ == "__main__":
    key = jax.random.PRNGKey(0)
    # Small NCHW-style input consistent with a conv-net activation.
    x = jax.random.normal(key, (2, 4, 16, 16), dtype=jnp.float32)

    layer = TanhPallas()
    y = layer.forward(x)
    y = jax.block_until_ready(y)

    # Sanity check against plain JAX tanh.
    ref = jnp.tanh(x)
    assert y.shape == x.shape and y.dtype == x.dtype
    assert jnp.allclose(y, ref, atol=1e-6, rtol=1e-6)

    # Also exercise a 1-D, non-multiple-of-1024 case through the same path.
    x1 = jax.random.normal(jax.random.PRNGKey(1), (5000,), dtype=jnp.float32)
    y1 = jax.block_until_ready(tanh_pallas(x1))
    assert jnp.allclose(y1, jnp.tanh(x1), atol=1e-6, rtol=1e-6)

    print("KERNEL_OK")
</pallas_src>

<mosaic_0001>
module attributes {stable_mosaic.version = 11 : i64} {
  func.func @_tanh_kernel(%arg0: i32, %arg1: memref<2x1024xf32, #tpu.memory_space<vmem>>, %arg2: memref<2x1024xf32, #tpu.memory_space<vmem>>) attributes {dimension_semantics = [#tpu.dimension_semantics<parallel>], iteration_bounds = array<i64: 1>, scalar_prefetch = 0 : i64, scratch_operands = 0 : i64, tpu.core_type = #tpu.core_type<tc>, window_params = [{transform_indices = @transform_0, window_bounds = array<i64: 2, 1024>}, {transform_indices = @transform_1, window_bounds = array<i64: 2, 1024>}]} {
    %c0 = arith.constant 0 : index
    %c0_0 = arith.constant 0 : index
    %0 = vector.load %arg1[%c0, %c0_0] : memref<2x1024xf32, #tpu.memory_space<vmem>>, vector<2x1024xf32>
    %1 = math.tanh %0 : vector<2x1024xf32>
    %c0_1 = arith.constant 0 : index
    %c0_2 = arith.constant 0 : index
    %2 = vector.load %arg2[%c0_1, %c0_2] : memref<2x1024xf32, #tpu.memory_space<vmem>>, vector<2x1024xf32>
    tpu.vector_store %arg2[%c0_1, %c0_2], %1 {strides = array<i32>} : memref<2x1024xf32, #tpu.memory_space<vmem>>, vector<2x1024xf32>,
    return
  }
  func.func @transform_0(%arg0: i32) -> (i32, i32) {
    %c0_i32 = arith.constant 0 : i32
    %c0_i32_0 = arith.constant 0 : i32
    return %arg0, %c0_i32 : i32, i32
  }
  func.func @transform_1(%arg0: i32) -> (i32, i32) {
    %c0_i32 = arith.constant 0 : i32
    %c0_i32_0 = arith.constant 0 : i32
    return %arg0, %c0_i32 : i32, i32
  }
}

</mosaic_0001>

<llo_original>
// kernel: tpu_custom_call.1
$region0: #{tpu_custom_call.1}
  #allocation0 [shape = 'u32[]', space=smem, size = 0x4, offset = 0x4, fixed_abs, tag = 'smem constant byte address 0x4 - core index']
  #allocation1 [shape = 'u32[144,128]{1,0:T(1,128)}', space=vmem, size = 0x12000, scoped, tag = 'internal scratch']
  %s0 = inlined_call_operand.hbm [shape: f32[2,1024], index: 0, kind: input, shape index: {}]
  %s1 = inlined_call_operand.hbm [shape: f32[2,1024], index: 1, kind: output, shape index: {}]
  %s2 = sld [smem:[#allocation0]]
  $region18: #{tpu_custom_call.1} parent=0
    _
  %s4 = ssub.s32 1, %s2
  %s5 = scalar_select 0, %s4, %s2
  $region1: #{tpu_custom_call.1} parent=0
    #allocation2 [shape = 'u8[8192]{0}', space=vmem, size = 0x2000, scoped, tag = 'input window, operand 0, single buffered']
    #allocation3 [shape = 's32[1]{0}', space=sflag, size = 0x4, scoped, tag = 'scoped memory for tpu_custom_call.1']
    #allocation4 [shape = 's32[1]{0}', space=sflag, size = 0x4, scoped, tag = 'scoped memory for tpu_custom_call.1']
    #allocation5 [shape = 'u8[8192]{0}', space=vmem, size = 0x2000, scoped, tag = 'output window, operand 0, single buffered']
    %6 = vsyncpa [#allocation3], 0
    %7 = vsyncpa [#allocation4], 0
    // Predicated region
    $region2: #{tpu_custom_call.1} parent=1 // pred_check
      _
    $region3: #{tpu_custom_call.1} parent=1 // pred_check_branch
      %9 = sbr.rel (0) target = $region5
    $region4: #{tpu_custom_call.1} parent=1 // pred_region
      %s11 = ssub.s32 256, 256
      %12 = vsyncadd [#allocation3], %s11
      %s14 = sshll.u32 [#allocation2], 4
      %s15 = int_to_ptr.vmem [resolvable:$true] %s14
      %17 = dma.hbm_to_vmem [thread:$0]  %s0, 256, %s15, [#allocation3]
    $region5: #{tpu_custom_call.1} parent=1 // pred_fallthru
      _
    // Predicated region
    $region6: #{tpu_custom_call.1} parent=1 // pred_check
      _
    $region7: #{tpu_custom_call.1} parent=1 // pred_check_branch
      %19 = sbr.rel (0) target = $region9
    $region8: #{tpu_custom_call.1} parent=1 // pred_region
      %20 = dma.done [#allocation3], 256
    $region9: #{tpu_custom_call.1} parent=1 // pred_fallthru
      _
    %v21 = vld [vmem:[#allocation2] sm:$0xff]
    %v22 = vld [vmem:[#allocation2 + $0x8] sm:$0xff]
    %v23 = vtanh.pop %v21
    %v24 = vtanh.pop %v22
    %25 = vst [vmem:[#allocation5] sm:$0xff] %v23
    %26 = vst [vmem:[#allocation5 + $0x8] sm:$0xff] %v24
    // Predicated region
    $region10: #{tpu_custom_call.1} parent=1 // pred_check
      _
    $region11: #{tpu_custom_call.1} parent=1 // pred_check_branch
      %28 = sbr.rel (0) target = $region13
    $region12: #{tpu_custom_call.1} parent=1 // pred_region
      %s30 = ssub.s32 256, 256
      %31 = vsyncadd [#allocation4], %s30
      %s33 = sshll.u32 [#allocation5], 4
      %s34 = int_to_ptr.vmem [resolvable:$true] %s33
      %36 = dma.vmem_to_hbm [thread:$0]  %s34, 256, %s1, [#allocation4]
    $region13: #{tpu_custom_call.1} parent=1 // pred_fallthru
      _
    // Predicated region
    $region14: #{tpu_custom_call.1} parent=1 // pred_check
      _
    $region15: #{tpu_custom_call.1} parent=1 // pred_check_branch
      %38 = sbr.rel (0) target = $region17
    $region16: #{tpu_custom_call.1} parent=1 // pred_region
      %39 = dma.done [#allocation4], 256
    $region17: #{tpu_custom_call.1} parent=1 // pred_fallthru
      _
    %40 = vsyncpa [#allocation3], 1
    %41 = vsyncpa [#allocation4], 1

</llo_original>
